<compile_context>
chip_gen: v6e
topology: v6e:2x2x1
jax: 0.10.0
libtpu: 0.0.40
codegen_flags: <defaults>
</compile_context>

<pallas_src>
import math

import numpy as np
import jax
import jax.numpy as jnp
from jax import lax
from jax.experimental import pallas as pl
from jax.experimental.pallas import tpu as pltpu

_EW_ROW_TILE = 2048   # elementwise / modulate row tile (2048 x 128 f32 = 1 MiB per operand)
_MM_ROW_TILE = 512    # MXU row tile for the fused transformer-block kernel


# ------------------------------- helpers ------------------------------------

def _round_up(x, m):
    return ((x + m - 1) // m) * m


def _choose_tile(rows, max_tile):
    return int(min(max_tile, _round_up(rows, 8)))


# ------------------- in-kernel noise (VPU-only, grid-invariant) --------------

def _hash_u32(x):
    x = x * jnp.uint32(0x9E3779B1)
    x = x ^ (x >> 16)
    x = x * jnp.uint32(0x85EBCA6B)
    x = x ^ (x >> 13)
    x = x * jnp.uint32(0xC2B2AE35)
    x = x ^ (x >> 16)
    return x


def _gauss_noise(tm, d, row_offset, seed_u32):
    # TODO(synk): torch.randn_like is an exact Gaussian; this is an Irwin-Hall(4)
    #             sum-of-uniforms approximation from a counter hash (VPU-only, no EUP).
    row = lax.broadcasted_iota(jnp.int32, (tm, d), 0) + row_offset
    col = lax.broadcasted_iota(jnp.int32, (tm, d), 1)
    gidx = (row * d + col).astype(jnp.uint32)          # global element index -> tile-invariant
    bits = _hash_u32(gidx ^ seed_u32)
    b0 = (bits & jnp.uint32(0xFF)).astype(jnp.int32).astype(jnp.float32)
    b1 = ((bits >> 8) & jnp.uint32(0xFF)).astype(jnp.int32).astype(jnp.float32)
    b2 = ((bits >> 16) & jnp.uint32(0xFF)).astype(jnp.int32).astype(jnp.float32)
    b3 = (bits >> 24).astype(jnp.int32).astype(jnp.float32)
    s = b0 + b1 + b2 + b3
    # mean 510, std sqrt(4 * (256^2 - 1) / 12) = 147.8005
    return (s - 510.0) * jnp.float32(1.0 / 147.8005)


# ----------------------------- Pallas kernels -------------------------------

def _modulate_kernel(fp_ref, ip_ref, h_ref, mod_ref):
    # fp_ref (SMEM f32): [sqrt_alpha_cumprod[t], sqrt_one_minus_alpha_cumprod[t]]
    # ip_ref (SMEM i32): [noise_seed, real_row_count]
    i = pl.program_id(0)
    tm, d = h_ref.shape
    noise = _gauss_noise(tm, d, i * tm, ip_ref[0].astype(jnp.uint32))
    h = h_ref[...].astype(jnp.float32)
    mod_ref[...] = (fp_ref[0] * h + fp_ref[1] * noise).astype(mod_ref.dtype)


def _modulate_stats_kernel(fp_ref, ip_ref, h_ref, prev_ref, mod_ref, dpart_ref, npart_ref):
    # Fused SDE modulation + rel-L1 partial sums (only called when the similarity test
    # will actually be consulted).
    i = pl.program_id(0)
    tm, d = h_ref.shape
    noise = _gauss_noise(tm, d, i * tm, ip_ref[0].astype(jnp.uint32))
    h = h_ref[...].astype(jnp.float32)
    mod = fp_ref[0] * h + fp_ref[1] * noise
    mod_ref[...] = mod.astype(mod_ref.dtype)

    # rel-L1 partial sums, lane-dense (8, 128) per tile; ragged-tail rows masked out.
    row = lax.broadcasted_iota(jnp.int32, (tm, 1), 0) + i * tm
    valid = row < ip_ref[1]
    prev = prev_ref[...].astype(jnp.float32)
    absd = jnp.where(valid, jnp.abs(prev - mod), 0.0)   # |prev_modulated - modulated|
    absn = jnp.where(valid, jnp.abs(prev), 0.0)         # |prev_modulated|
    dpart_ref[...] = jnp.sum(absd.reshape(tm // 8, 8, d), axis=0)
    npart_ref[...] = jnp.sum(absn.reshape(tm // 8, 8, d), axis=0)


def _fused_blocks_kernel(x_ref, w_ref, b_ref, y_ref, res_ref):
    # Entire synthetic transformer-block stack fused in one pass:
    #   for each block: y = y + tanh(y @ W_b + bias_b)   (bf16 MXU operands, f32 accumulate)
    # plus the cache residual (y_final - x) written in the same pass.
    x = x_ref[...].astype(jnp.float32)
    y = x
    num_blocks = w_ref.shape[0]
    for bi in range(num_blocks):            # static unroll; weight stack resident in VMEM
        z = jnp.dot(y.astype(jnp.bfloat16), w_ref[bi],
                    preferred_element_type=jnp.float32)
        # TODO(synk): on v6e/v7x a bf16 tanh epilogue would halve EUP pressure; kept f32 (v5e-safe).
        y = y + jnp.tanh(z + b_ref[bi])
    y_ref[...] = y.astype(y_ref.dtype)
    res_ref[...] = (y - x).astype(res_ref.dtype)


# --------------------------- pallas_call wrappers ----------------------------

@jax.jit
def _modulate_only(h2d, fparams, iparams):
    rows, d = h2d.shape
    tm = _choose_tile(rows, _EW_ROW_TILE)
    g = pl.cdiv(rows, tm)
    return pl.pallas_call(
        _modulate_kernel,
        out_shape=jax.ShapeDtypeStruct((rows, d), h2d.dtype),
        grid=(g,),
        in_specs=[pl.BlockSpec(memory_space=pltpu.MemorySpace.SMEM),
                  pl.BlockSpec(memory_space=pltpu.MemorySpace.SMEM),
                  pl.BlockSpec((tm, d), lambda i: (i, 0))],
        out_specs=pl.BlockSpec((tm, d), lambda i: (i, 0)),
        compiler_params=pltpu.CompilerParams(dimension_semantics=("parallel",)),
    )(fparams, iparams, h2d)


@jax.jit
def _modulate_and_stats(h2d, prev2d, fparams, iparams):
    rows, d = h2d.shape
    tm = _choose_tile(rows, _EW_ROW_TILE)
    g = pl.cdiv(rows, tm)
    mod, dpart, npart = pl.pallas_call(
        _modulate_stats_kernel,
        out_shape=(jax.ShapeDtypeStruct((rows, d), h2d.dtype),
                   jax.ShapeDtypeStruct((g * 8, d), jnp.float32),
                   jax.ShapeDtypeStruct((g * 8, d), jnp.float32)),
        grid=(g,),
        in_specs=[pl.BlockSpec(memory_space=pltpu.MemorySpace.SMEM),
                  pl.BlockSpec(memory_space=pltpu.MemorySpace.SMEM),
                  pl.BlockSpec((tm, d), lambda i: (i, 0)),
                  pl.BlockSpec((tm, d), lambda i: (i, 0))],
        out_specs=(pl.BlockSpec((tm, d), lambda i: (i, 0)),
                   pl.BlockSpec((8, d), lambda i: (i, 0)),
                   pl.BlockSpec((8, d), lambda i: (i, 0))),
        compiler_params=pltpu.CompilerParams(dimension_semantics=("parallel",)),
    )(fparams, iparams, h2d, prev2d)
    # Final tiny cross-lane reduction happens once, outside the kernel.
    stats = jnp.stack([jnp.sum(dpart), jnp.sum(npart)])
    return mod, stats


def _fused_blocks_call(x2d, w_stack, b_stack):
    rows, d = x2d.shape
    nb = w_stack.shape[0]
    tm = _choose_tile(rows, _MM_ROW_TILE)
    g = pl.cdiv(rows, tm)
    # TODO(synk): for real model dims (NB*D*D*2B large) move the block index onto a grid axis
    #             instead of full [NB,D,D] VMEM residency (v7x has only 64 MiB VMEM).
    return pl.pallas_call(
        _fused_blocks_kernel,
        out_shape=(jax.ShapeDtypeStruct((rows, d), x2d.dtype),
                   jax.ShapeDtypeStruct((rows, d), x2d.dtype)),
        grid=(g,),
        in_specs=[pl.BlockSpec((tm, d), lambda i: (i, 0)),
                  pl.BlockSpec((nb, d, d), lambda i: (0, 0, 0)),
                  pl.BlockSpec((nb, 1, d), lambda i: (0, 0, 0))],
        out_specs=(pl.BlockSpec((tm, d), lambda i: (i, 0)),
                   pl.BlockSpec((tm, d), lambda i: (i, 0))),
        compiler_params=pltpu.CompilerParams(dimension_semantics=("parallel",)),
    )(x2d, w_stack, b_stack)


@jax.jit
def _process_blocks_pair(h2d, e2d, wh, bh, we, be):
    # TODO(synk): hidden/encoder streams have different row counts, so they stay as two
    #             pallas_calls inside one jit (a shared stream grid axis would need repadding).
    yh, rh = _fused_blocks_call(h2d, wh, bh)
    ye, re = _fused_blocks_call(e2d, we, be)
    return yh, rh, ye, re


@jax.jit
def _cached_add_pair(h2d, hres, e2d, eres):
    # Cached path is a single elementwise add per stream: XLA fuses it; a Pallas launch here
    # would be pure overhead (per the perf review).
    return h2d + hres, e2d + eres


# --------------------------- module re-implementation -----------------------

class SDECachedTransformerBlocksPallas:
    def __init__(self, *, num_blocks=2, dim=128, rel_l1_thresh=0.6,
                 sde_epsilon=0.02, num_steps=50, beta_schedule_type="linear",
                 beta_start=1e-4, beta_end=0.02, cosine_s=0.008, seed=0):
        if num_steps <= 0:
            raise ValueError(f"num_steps must be positive, got {num_steps}")
        self.dim = dim
        self.rel_l1_thresh = float(rel_l1_thresh)
        self.sde_epsilon = float(sde_epsilon)
        self.num_steps = int(num_steps)
        self.return_hidden_states_first = True

        # --- beta schedule (host-side, mirrors init_beta_schedule / init_sde_params)
        if beta_schedule_type == "linear":
            betas = np.linspace(beta_start, beta_end, num_steps, dtype=np.float32)
        elif beta_schedule_type == "cosine":
            steps = np.arange(num_steps + 1, dtype=np.float32) / num_steps
            ac = np.cos((steps + cosine_s) / (1 + cosine_s) * math.pi / 2) ** 2
            ac = ac / ac[0]
            betas = 1 - ac[1:] / ac[:-1]
            betas = np.clip(betas, None, 0.999)
            betas = np.where(betas < beta_start, beta_start, betas).astype(np.float32)
        else:
            raise ValueError(f"Unsupported beta schedule type: {beta_schedule_type}")
        self.beta_schedule = betas
        self.alpha_schedule = 1.0 - betas
        self.alpha_cumprod = np.cumprod(self.alpha_schedule)
        self.sqrt_alpha_cumprod = np.sqrt(self.alpha_cumprod)
        self.sqrt_one_minus_alpha_cumprod = np.sqrt(1.0 - self.alpha_cumprod)

        # --- deterministic synthetic transformer-block parameters (bf16 MXU weights)
        # TODO(synk): real HF transformer blocks are not available; a synthetic
        #             y = x + tanh(x @ W + b) block stands in for the MXU hot path.
        key = jax.random.PRNGKey(seed)
        wh_list, we_list = [], []
        for _ in range(num_blocks):
            key, kh, ke = jax.random.split(key, 3)
            wh_list.append(jax.random.normal(kh, (dim, dim), jnp.float32) / math.sqrt(dim))
            we_list.append(jax.random.normal(ke, (dim, dim), jnp.float32) / math.sqrt(dim))
        self.w_hidden = jnp.stack(wh_list).astype(jnp.bfloat16)     # [NB, D, D]
        self.w_encoder = jnp.stack(we_list).astype(jnp.bfloat16)    # [NB, D, D]
        self.b_hidden = jnp.zeros((num_blocks, 1, dim), jnp.float32)
        self.b_encoder = jnp.zeros((num_blocks, 1, dim), jnp.float32)
        # TODO(synk): single_transformer_blocks concat/split path not exercised (None here).
        self.single_transformer_blocks = None

        # --- mutable state (buffers in the torch module)
        self.cnt = 0
        self.last_updated_timestep = -1
        self.cache_interval = 1
        self.use_cache = False
        self._seed_base = int(seed) + 1
        self._noise_counter = 0
        self._prev_modulated = None
        self._orig_hidden = None
        self._orig_encoder = None
        self._hidden_residual = None
        self._encoder_residual = None

    # ---- host-side scalar helpers (mirror the .item()-based torch logic) ----
    def _get_timestep(self):
        if self.cnt < 0 or self.cnt >= self.num_steps:
            raise ValueError(f"Current timestep {self.cnt} out of bounds")
        return self.cnt

    def _compute_lambda(self, t):
        g_t = math.sqrt(2.0 * float(self.beta_schedule[t]))
        alpha_t = max(float(self.alpha_schedule[t]), 1e-8)
        return g_t / math.sqrt(alpha_t)

    def _compute_cache_interval(self, lambda_t):
        if lambda_t < 1e-6:
            return 1
        inv_lambda_sq = 1.0 / (lambda_t ** 2)
        upper = max(1, self.num_steps // 5)          # guard: never 0
        return int(min(max(inv_lambda_sq, 1.0), float(upper)))

    # ---- forward ----
    def __call__(self, hidden_states, encoder_hidden_states):
        B, S, D = hidden_states.shape
        Be, Se, De = encoder_hidden_states.shape
        h2d = hidden_states.reshape(B * S, D)
        e2d = encoder_hidden_states.reshape(Be * Se, De)

        t = self._get_timestep()
        sa = float(self.sqrt_alpha_cumprod[t])
        soma = float(self.sqrt_one_minus_alpha_cumprod[t])
        self._noise_counter += 1
        step_seed = (self._seed_base * 1000003 + self._noise_counter * 7919) % (2 ** 31 - 1)
        fparams = jnp.array([sa, soma], jnp.float32)
        iparams = jnp.array([step_seed, B * S], jnp.int32)

        prev = self._prev_modulated
        if prev is not None and prev.shape != h2d.shape:
            # Shape change: previous modulated inputs and residuals are stale -> disable cache.
            prev = None
            self._hidden_residual = None
            self._encoder_residual = None
            self.last_updated_timestep = -1

        lam = self._compute_lambda(t)
        # The similarity test is only consulted when prev exists AND lambda(t) <= epsilon;
        # both are known on the host, so skip the prev read + stats otherwise.
        need_stats = (prev is not None) and (lam <= self.sde_epsilon)

        if need_stats:
            modulated, stats = _modulate_and_stats(h2d, prev, fparams, iparams)
        else:
            modulated = _modulate_only(h2d, fparams, iparams)
            stats = None
        self._prev_modulated = modulated
        self._orig_hidden = h2d
        self._orig_encoder = e2d

        # are_two_tensor_similar (host control flow, mirrors .item() logic)
        use_cache = False
        if prev is not None:
            self.cache_interval = self._compute_cache_interval(lam)
            if need_stats:
                # single device->host sync: both L1 sums fetched together
                # TODO(synk): sequence-parallel all_reduce omitted (single-device kernel).
                d_sum, n_sum = np.asarray(stats)
                rel = float(d_sum) / float(n_sum) if float(n_sum) != 0.0 else float("inf")
                use_cache = (rel < self.rel_l1_thresh) and (self.cnt % self.cache_interval == 0)
        self.use_cache = bool(use_cache)

        if (self.use_cache and self.last_updated_timestep != self.cnt
                and self._hidden_residual is not None):
            hidden2d, encoder2d = _cached_add_pair(
                h2d, self._hidden_residual, e2d, self._encoder_residual)
        else:
            hidden2d, self._hidden_residual, encoder2d, self._encoder_residual = \
                _process_blocks_pair(h2d, e2d,
                                     self.w_hidden, self.b_hidden,
                                     self.w_encoder, self.b_encoder)
            self.last_updated_timestep = self.cnt

        self.cnt = self.cnt + 1 if self.cnt + 1 < self.num_steps else 0

        hidden = hidden2d.reshape(B, S, D)
        encoder = encoder2d.reshape(Be, Se, De)
        return (hidden, encoder) if self.return_hidden_states_first else (encoder, hidden)

    def reset(self):
        self.cnt = 0
        self.last_updated_timestep = -1
        self.cache_interval = 1
        self._prev_modulated = None
        self._hidden_residual = None
        self._encoder_residual = None
        self.use_cache = False


# ----------------------------------- main -----------------------------------

if __name__ == "__main__":
    key = jax.random.PRNGKey(0)
    kh, ke = jax.random.split(key)

    B, S, S_enc, D = 2, 16, 8, 128
    hidden = jax.random.normal(kh, (B, S, D), jnp.float32)
    encoder = jax.random.normal(ke, (B, S_enc, D), jnp.float32)

    module = SDECachedTransformerBlocksPallas(
        num_blocks=2, dim=D, rel_l1_thresh=0.6, sde_epsilon=0.02,
        num_steps=8, beta_schedule_type="linear",
        beta_start=1e-4, beta_end=1e-4, seed=0)

    # step 0: no previous modulated inputs -> full fused transformer-block path
    h1, e1 = module(hidden, encoder)
    # step 1: lambda(t) <= epsilon and tensors similar -> cached residual-add path
    h2, e2 = module(hidden, encoder)
    jax.block_until_ready((h1, e1, h2, e2))

    assert h1.shape == (B, S, D) and e1.shape == (B, S_enc, D)
    assert h2.shape == (B, S, D) and e2.shape == (B, S_enc, D)

    # Correctness smoke tests.
    # (a) fused block kernel vs plain-JAX reference (same bf16-operand / f32-accumulate math)
    def _ref_blocks(x2d, w_stack, b_stack):
        y = x2d
        for bi in range(w_stack.shape[0]):
            z = jnp.dot(y.astype(jnp.bfloat16), w_stack[bi],
                        preferred_element_type=jnp.float32)
            y = y + jnp.tanh(z + b_stack[bi])
        return y
    ref_h1 = _ref_blocks(hidden.reshape(B * S, D), module.w_hidden,
                         module.b_hidden).reshape(B, S, D)
    np.testing.assert_allclose(np.asarray(h1), np.asarray(ref_h1), rtol=2e-2, atol=2e-2)
    # (b) cached path (x + (y - x)) must reproduce the block output for identical inputs
    np.testing.assert_allclose(np.asarray(h2), np.asarray(h1), rtol=1e-4, atol=1e-4)
    np.testing.assert_allclose(np.asarray(e2), np.asarray(e1), rtol=1e-4, atol=1e-4)

    print("KERNEL_OK")
</pallas_src>

<mosaic_0001>
module attributes {stable_mosaic.version = 11 : i64} {
  func.func @_modulate_kernel(%arg0: i32, %arg1: memref<2xf32, #tpu.memory_space<smem>>, %arg2: memref<2xi32, #tpu.memory_space<smem>>, %arg3: memref<32x128xf32, #tpu.memory_space<vmem>>, %arg4: memref<32x128xf32, #tpu.memory_space<vmem>>) attributes {dimension_semantics = [#tpu.dimension_semantics<parallel>], iteration_bounds = array<i64: 1>, scalar_prefetch = 0 : i64, scratch_operands = 0 : i64, tpu.core_type = #tpu.core_type<tc>, window_params = [{transform_indices = @transform_0, window_bounds = array<i64: 2>}, {transform_indices = @transform_1, window_bounds = array<i64: 2>}, {transform_indices = @transform_2, window_bounds = array<i64: 32, 128>}, {transform_indices = @transform_3, window_bounds = array<i64: 32, 128>}]} {
    %c32_i32 = arith.constant 32 : i32
    %0 = arith.muli %arg0, %c32_i32 : i32
    %c0 = arith.constant 0 : index
    %1 = memref.load %arg2[%c0] : memref<2xi32, #tpu.memory_space<smem>>
    %2 = tpu.iota {dimensions = array<i32: 0>} : vector<32x128xi32>
    %3 = vector.broadcast %0 : i32 to vector<32x128xi32>
    %4 = arith.addi %2, %3 : vector<32x128xi32>
    %5 = tpu.iota {dimensions = array<i32: 1>} : vector<32x128xi32>
    %c128_i32 = arith.constant 128 : i32
    %6 = vector.broadcast %c128_i32 : i32 to vector<32x128xi32>
    %7 = arith.muli %4, %6 : vector<32x128xi32>
    %8 = arith.addi %7, %5 : vector<32x128xi32>
    %9 = vector.broadcast %1 : i32 to vector<32x128xi32>
    %10 = arith.xori %8, %9 : vector<32x128xi32>
    %c-1640531535_i32 = arith.constant -1640531535 : i32
    %11 = vector.broadcast %c-1640531535_i32 : i32 to vector<32x128xi32>
    %12 = arith.muli %10, %11 : vector<32x128xi32>
    %c16_i32 = arith.constant 16 : i32
    %13 = vector.broadcast %c16_i32 : i32 to vector<32x128xi32>
    %14 = arith.shrui %12, %13 : vector<32x128xi32>
    %15 = arith.xori %12, %14 : vector<32x128xi32>
    %c-2048144789_i32 = arith.constant -2048144789 : i32
    %16 = vector.broadcast %c-2048144789_i32 : i32 to vector<32x128xi32>
    %17 = arith.muli %15, %16 : vector<32x128xi32>
    %c13_i32 = arith.constant 13 : i32
    %18 = vector.broadcast %c13_i32 : i32 to vector<32x128xi32>
    %19 = arith.shrui %17, %18 : vector<32x128xi32>
    %20 = arith.xori %17, %19 : vector<32x128xi32>
    %c-1028477387_i32 = arith.constant -1028477387 : i32
    %21 = vector.broadcast %c-1028477387_i32 : i32 to vector<32x128xi32>
    %22 = arith.muli %20, %21 : vector<32x128xi32>
    %c16_i32_0 = arith.constant 16 : i32
    %23 = vector.broadcast %c16_i32_0 : i32 to vector<32x128xi32>
    %24 = arith.shrui %22, %23 : vector<32x128xi32>
    %25 = arith.xori %22, %24 : vector<32x128xi32>
    %c255_i32 = arith.constant 255 : i32
    %26 = vector.broadcast %c255_i32 : i32 to vector<32x128xi32>
    %27 = arith.andi %25, %26 : vector<32x128xi32>
    %28 = arith.sitofp %27 : vector<32x128xi32> to vector<32x128xf32>
    %c8_i32 = arith.constant 8 : i32
    %29 = vector.broadcast %c8_i32 : i32 to vector<32x128xi32>
    %30 = arith.shrui %25, %29 : vector<32x128xi32>
    %c255_i32_1 = arith.constant 255 : i32
    %31 = vector.broadcast %c255_i32_1 : i32 to vector<32x128xi32>
    %32 = arith.andi %30, %31 : vector<32x128xi32>
    %33 = arith.sitofp %32 : vector<32x128xi32> to vector<32x128xf32>
    %c16_i32_2 = arith.constant 16 : i32
    %34 = vector.broadcast %c16_i32_2 : i32 to vector<32x128xi32>
    %35 = arith.shrui %25, %34 : vector<32x128xi32>
    %c255_i32_3 = arith.constant 255 : i32
    %36 = vector.broadcast %c255_i32_3 : i32 to vector<32x128xi32>
    %37 = arith.andi %35, %36 : vector<32x128xi32>
    %38 = arith.sitofp %37 : vector<32x128xi32> to vector<32x128xf32>
    %c24_i32 = arith.constant 24 : i32
    %39 = vector.broadcast %c24_i32 : i32 to vector<32x128xi32>
    %40 = arith.shrui %25, %39 : vector<32x128xi32>
    %41 = arith.sitofp %40 : vector<32x128xi32> to vector<32x128xf32>
    %42 = arith.addf %28, %33 : vector<32x128xf32>
    %43 = arith.addf %42, %38 : vector<32x128xf32>
    %44 = arith.addf %43, %41 : vector<32x128xf32>
    %cst = arith.constant 5.100000e+02 : f32
    %45 = vector.broadcast %cst : f32 to vector<32x128xf32>
    %46 = arith.subf %44, %45 : vector<32x128xf32>
    %cst_4 = arith.constant 0.0067658769 : f32
    %47 = vector.broadcast %cst_4 : f32 to vector<32x128xf32>
    %48 = arith.mulf %46, %47 : vector<32x128xf32>
    %c0_5 = arith.constant 0 : index
    %c0_6 = arith.constant 0 : index
    %49 = vector.load %arg3[%c0_5, %c0_6] : memref<32x128xf32, #tpu.memory_space<vmem>>, vector<32x128xf32>
    %c0_7 = arith.constant 0 : index
    %50 = memref.load %arg1[%c0_7] : memref<2xf32, #tpu.memory_space<smem>>
    %51 = vector.broadcast %50 : f32 to vector<32x128xf32>
    %52 = arith.mulf %51, %49 : vector<32x128xf32>
    %c1 = arith.constant 1 : index
    %53 = memref.load %arg1[%c1] : memref<2xf32, #tpu.memory_space<smem>>
    %54 = vector.broadcast %53 : f32 to vector<32x128xf32>
    %55 = arith.mulf %54, %48 : vector<32x128xf32>
    %56 = arith.addf %52, %55 : vector<32x128xf32>
    %c0_8 = arith.constant 0 : index
    %c0_9 = arith.constant 0 : index
    %57 = vector.load %arg4[%c0_8, %c0_9] : memref<32x128xf32, #tpu.memory_space<vmem>>, vector<32x128xf32>
    tpu.vector_store %arg4[%c0_8, %c0_9], %56 {strides = array<i32>} : memref<32x128xf32, #tpu.memory_space<vmem>>, vector<32x128xf32>,
    return
  }
  func.func @transform_0(%arg0: i32) -> i32 {
    %c0_i32 = arith.constant 0 : i32
    %c0_i32_0 = arith.constant 0 : i32
    return %c0_i32 : i32
  }
  func.func @transform_1(%arg0: i32) -> i32 {
    %c0_i32 = arith.constant 0 : i32
    %c0_i32_0 = arith.constant 0 : i32
    return %c0_i32 : i32
  }
  func.func @transform_2(%arg0: i32) -> (i32, i32) {
    %c0_i32 = arith.constant 0 : i32
    %c0_i32_0 = arith.constant 0 : i32
    return %arg0, %c0_i32 : i32, i32
  }
  func.func @transform_3(%arg0: i32) -> (i32, i32) {
    %c0_i32 = arith.constant 0 : i32
    %c0_i32_0 = arith.constant 0 : i32
    return %arg0, %c0_i32 : i32, i32
  }
}

</mosaic_0001>

<llo_original>
// kernel: _modulate_only.1
$region0: #{_modulate_only.1}
  #allocation0 [shape = 'u32[]', space=smem, size = 0x4, offset = 0x4, fixed_abs, tag = 'smem constant byte address 0x4 - core index']
  #allocation1 [shape = 'u32[144,128]{1,0:T(1,128)}', space=vmem, size = 0x12000, scoped, tag = 'internal scratch']
  %s0 = inlined_call_operand.vmem [shape: f32[2], index: 0, kind: input, shape index: {}]
  %s1 = inlined_call_operand.vmem [shape: s32[2], index: 1, kind: input, shape index: {}]
  %s2 = inlined_call_operand.hbm [shape: f32[32,128], index: 2, kind: input, shape index: {}]
  %s3 = inlined_call_operand.hbm [shape: f32[32,128], index: 3, kind: output, shape index: {}]
  %s4 = sld [smem:[#allocation0]]
  $region34: #{_modulate_only.1} parent=0
    _
  %s6 = ssub.s32 1, %s4
  %s7 = scalar_select 0, %s6, %s4
  $region1: #{_modulate_only.1} parent=0
    #allocation2 [shape = 'u8[512]{0}', space=smem, size = 0x200, scoped, tag = 'input window, operand 0, single buffered']
    #allocation3 [shape = 's32[1]{0}', space=sflag, size = 0x4, scoped, tag = 'scoped memory for _modulate_only.1']
    #allocation4 [shape = 's32[1]{0}', space=sflag, size = 0x4, scoped, tag = 'scoped memory for _modulate_only.1']
    #allocation5 [shape = 's32[1]{0}', space=sflag, size = 0x4, scoped, tag = 'scoped memory for _modulate_only.1']
    #allocation6 [shape = 'u8[512]{0}', space=smem, size = 0x200, scoped, tag = 'input window, operand 1, single buffered']
    #allocation7 [shape = 's32[1]{0}', space=sflag, size = 0x4, scoped, tag = 'scoped memory for _modulate_only.1']
    #allocation8 [shape = 'u8[16384]{0}', space=vmem, size = 0x4000, scoped, tag = 'input window, operand 2, single buffered']
    #allocation9 [shape = 'u8[16384]{0}', space=vmem, size = 0x4000, scoped, tag = 'output window, operand 0, single buffered']
    %8 = vsyncpa [#allocation5], 0
    %9 = vsyncpa [#allocation7], 0
    %10 = vsyncpa [#allocation3], 0
    %11 = vsyncpa [#allocation4], 0
    // Predicated region
    $region2: #{_modulate_only.1} parent=1 // pred_check
      _
    $region3: #{_modulate_only.1} parent=1 // pred_check_branch
      %13 = sbr.rel (0) target = $region5
    $region4: #{_modulate_only.1} parent=1 // pred_region
      %s15 = ssub.s32 16, 16
      %16 = vsyncadd [#allocation5], %s15
      %s18 = sshll.u32 %s0, 4
      %s19 = int_to_ptr.vmem [resolvable:$true] %s18
      %21 = dma.vmem_to_smem %s19, 16, [#allocation2], [#allocation5]
    $region5: #{_modulate_only.1} parent=1 // pred_fallthru
      _
    // Predicated region
    $region6: #{_modulate_only.1} parent=1 // pred_check
      _
    $region7: #{_modulate_only.1} parent=1 // pred_check_branch
      %23 = sbr.rel (0) target = $region9
    $region8: #{_modulate_only.1} parent=1 // pred_region
      %s25 = ssub.s32 16, 16
      %26 = vsyncadd [#allocation7], %s25
      %s28 = sshll.u32 %s1, 4
      %s29 = int_to_ptr.vmem [resolvable:$true] %s28
      %31 = dma.vmem_to_smem %s29, 16, [#allocation6], [#allocation7]
    $region9: #{_modulate_only.1} parent=1 // pred_fallthru
      _
    // Predicated region
    $region10: #{_modulate_only.1} parent=1 // pred_check
      _
    $region11: #{_modulate_only.1} parent=1 // pred_check_branch
      %33 = sbr.rel (0) target = $region13
    $region12: #{_modulate_only.1} parent=1 // pred_region
      %s35 = ssub.s32 512, 512
      %36 = vsyncadd [#allocation3], %s35
      %s37 = sshll.u32 [#allocation8], 4
      %s38 = int_to_ptr.vmem [resolvable:$true] %s37
      %43 = dma.hbm_to_vmem [thread:$0]  %s2, 512, %s38, [#allocation3], 128, 128, 8
    $region13: #{_modulate_only.1} parent=1 // pred_fallthru
      _
    // Predicated region
    $region14: #{_modulate_only.1} parent=1 // pred_check
      _
    $region15: #{_modulate_only.1} parent=1 // pred_check_branch
      %45 = sbr.rel (0) target = $region17
    $region16: #{_modulate_only.1} parent=1 // pred_region
      %46 = dma.done [#allocation5], 16
    $region17: #{_modulate_only.1} parent=1 // pred_fallthru
      _
    // Predicated region
    $region18: #{_modulate_only.1} parent=1 // pred_check
      _
    $region19: #{_modulate_only.1} parent=1 // pred_check_branch
      %48 = sbr.rel (0) target = $region21
    $region20: #{_modulate_only.1} parent=1 // pred_region
      %49 = dma.done [#allocation7], 16
    $region21: #{_modulate_only.1} parent=1 // pred_fallthru
      _
    // Predicated region
    $region22: #{_modulate_only.1} parent=1 // pred_check
      _
    $region23: #{_modulate_only.1} parent=1 // pred_check_branch
      %51 = sbr.rel (0) target = $region25
    $region24: #{_modulate_only.1} parent=1 // pred_region
      %52 = dma.done [#allocation3], 512
    $region25: #{_modulate_only.1} parent=1 // pred_fallthru
      _
    %53 = sfence
    %s54 = smul.u32 0, 32
    %s55 = sld [smem:[#allocation6]]
    %v56 = vlaneseq
    %v57 = vshrl.u32 %v56, 7
    %v58 = vadd.s32 %v57, 8
    %v59 = vadd.s32 %v57, 16
    %v60 = vadd.s32 %v57, 24
    %v61 = vstv %s54
    %v62 = vadd.s32 %v57, %v61
    %v63 = vadd.s32 %v58, %v61
    %v64 = vadd.s32 %v59, %v61
    %v65 = vadd.s32 %v60, %v61
    %v66 = vlaneseq
    %v67 = vand.u32 %v66, 127
    %v68 = vmul.u32 %v62, 128
    %v69 = vmul.u32 %v63, 128
    %v70 = vmul.u32 %v64, 128
    %v71 = vmul.u32 %v65, 128
    %v72 = vadd.s32 %v68, %v67
    %v73 = vadd.s32 %v69, %v67
    %v74 = vadd.s32 %v70, %v67
    %v75 = vadd.s32 %v71, %v67
    %v76 = vstv %s55
    %v77 = vxor.u32 %v72, %v76
    %v78 = vxor.u32 %v73, %v76
    %v79 = vxor.u32 %v74, %v76
    %v80 = vxor.u32 %v75, %v76
    %v81 = vmul.u32 %v77, 2654435761
    %v82 = vmul.u32 %v78, 2654435761
    %v83 = vmul.u32 %v79, 2654435761
    %v84 = vmul.u32 %v80, 2654435761
    %v85 = vshrl.u32 %v81, 16
    %v86 = vshrl.u32 %v82, 16
    %v87 = vshrl.u32 %v83, 16
    %v88 = vshrl.u32 %v84, 16
    %v89 = vxor.u32 %v81, %v85
    %v90 = vxor.u32 %v82, %v86
    %v91 = vxor.u32 %v83, %v87
    %v92 = vxor.u32 %v84, %v88
    %v93 = vmul.u32 %v89, 2246822507
    %v94 = vmul.u32 %v90, 2246822507
    %v95 = vmul.u32 %v91, 2246822507
    %v96 = vmul.u32 %v92, 2246822507
    %v97 = vshrl.u32 %v93, 13
    %v98 = vshrl.u32 %v94, 13
    %v99 = vshrl.u32 %v95, 13
    %v100 = vshrl.u32 %v96, 13
    %v101 = vxor.u32 %v93, %v97
    %v102 = vxor.u32 %v94, %v98
    %v103 = vxor.u32 %v95, %v99
    %v104 = vxor.u32 %v96, %v100
    %v105 = vmul.u32 %v101, 3266489909
    %v106 = vmul.u32 %v102, 3266489909
    %v107 = vmul.u32 %v103, 3266489909
    %v108 = vmul.u32 %v104, 3266489909
    %v109 = vshrl.u32 %v105, 16
    %v110 = vshrl.u32 %v106, 16
    %v111 = vshrl.u32 %v107, 16
    %v112 = vshrl.u32 %v108, 16
    %v113 = vxor.u32 %v105, %v109
    %v114 = vxor.u32 %v106, %v110
    %v115 = vxor.u32 %v107, %v111
    %v116 = vxor.u32 %v108, %v112
    %v117 = vand.u32 %v113, 255
    %v118 = vand.u32 %v114, 255
    %v119 = vand.u32 %v115, 255
    %v120 = vand.u32 %v116, 255
    %v121 = vcvt.s32.f32 %v117
    %v122 = vcvt.s32.f32 %v118
    %v123 = vcvt.s32.f32 %v119
    %v124 = vcvt.s32.f32 %v120
    %v125 = vshrl.u32 %v113, 8
    %v126 = vshrl.u32 %v114, 8
    %v127 = vshrl.u32 %v115, 8
    %v128 = vshrl.u32 %v116, 8
    %v129 = vand.u32 %v125, 255
    %v130 = vand.u32 %v126, 255
    %v131 = vand.u32 %v127, 255
    %v132 = vand.u32 %v128, 255
    %v133 = vcvt.s32.f32 %v129
    %v134 = vcvt.s32.f32 %v130
    %v135 = vcvt.s32.f32 %v131
    %v136 = vcvt.s32.f32 %v132
    %v137 = vshrl.u32 %v113, 16
    %v138 = vshrl.u32 %v114, 16
    %v139 = vshrl.u32 %v115, 16
    %v140 = vshrl.u32 %v116, 16
    %v141 = vand.u32 %v137, 255
    %v142 = vand.u32 %v138, 255
    %v143 = vand.u32 %v139, 255
    %v144 = vand.u32 %v140, 255
    %v145 = vcvt.s32.f32 %v141
    %v146 = vcvt.s32.f32 %v142
    %v147 = vcvt.s32.f32 %v143
    %v148 = vcvt.s32.f32 %v144
    %v149 = vshrl.u32 %v113, 24
    %v150 = vshrl.u32 %v114, 24
    %v151 = vshrl.u32 %v115, 24
    %v152 = vshrl.u32 %v116, 24
    %v153 = vcvt.s32.f32 %v149
    %v154 = vcvt.s32.f32 %v150
    %v155 = vcvt.s32.f32 %v151
    %v156 = vcvt.s32.f32 %v152
    %v157 = vadd.f32 %v121, %v133
    %v158 = vadd.f32 %v122, %v134
    %v159 = vadd.f32 %v123, %v135
    %v160 = vadd.f32 %v124, %v136
    %v161 = vadd.f32 %v157, %v145
    %v162 = vadd.f32 %v158, %v146
    %v163 = vadd.f32 %v159, %v147
    %v164 = vadd.f32 %v160, %v148
    %v165 = vadd.f32 %v161, %v153
    %v166 = vadd.f32 %v162, %v154
    %v167 = vadd.f32 %v163, %v155
    %v168 = vadd.f32 %v164, %v156
    %v169 = vsub.f32 %v165, 510.0
    %v170 = vsub.f32 %v166, 510.0
    %v171 = vsub.f32 %v167, 510.0
    %v172 = vsub.f32 %v168, 510.0
    %v173 = vmul.f32 %v169, 0.006765877
    %v174 = vmul.f32 %v170, 0.006765877
    %v175 = vmul.f32 %v171, 0.006765877
    %v176 = vmul.f32 %v172, 0.006765877
    %v177 = vld [vmem:[#allocation8] sm:$0xff]
    %v178 = vld [vmem:[#allocation8 + $0x8] sm:$0xff]
    %v179 = vld [vmem:[#allocation8 + $0x10] sm:$0xff]
    %v180 = vld [vmem:[#allocation8 + $0x18] sm:$0xff]
    %s181 = sld [smem:[#allocation2]]
    %v182 = vstv %s181
    %v183 = vmul.f32 %v182, %v177
    %v184 = vmul.f32 %v182, %v178
    %v185 = vmul.f32 %v182, %v179
    %v186 = vmul.f32 %v182, %v180
    %s187 = sld [smem:[#allocation2 + $0x1]]
    %v188 = vstv %s187
    %v189 = vmul.f32 %v188, %v173
    %v190 = vmul.f32 %v188, %v174
    %v191 = vmul.f32 %v188, %v175
    %v192 = vmul.f32 %v188, %v176
    %v193 = vadd.f32 %v183, %v189
    %v194 = vadd.f32 %v184, %v190
    %v195 = vadd.f32 %v185, %v191
    %v196 = vadd.f32 %v186, %v192
    %197 = vst [vmem:[#allocation9] sm:$0xff] %v193
    %198 = vst [vmem:[#allocation9 + $0x8] sm:$0xff] %v194
    %199 = vst [vmem:[#allocation9 + $0x10] sm:$0xff] %v195
    %200 = vst [vmem:[#allocation9 + $0x18] sm:$0xff] %v196
    // Predicated region
    $region26: #{_modulate_only.1} parent=1 // pred_check
      _
    $region27: #{_modulate_only.1} parent=1 // pred_check_branch
      %202 = sbr.rel (0) target = $region29
    $region28: #{_modulate_only.1} parent=1 // pred_region
      %s204 = ssub.s32 512, 512
      %205 = vsyncadd [#allocation4], %s204
      %s206 = sshll.u32 [#allocation9], 4
      %s207 = int_to_ptr.vmem [resolvable:$true] %s206
      %212 = dma.vmem_to_hbm [thread:$0]  %s207, 512, %s3, [#allocation4], 128, 128, 8
    $region29: #{_modulate_only.1} parent=1 // pred_fallthru
      _
    // Predicated region
    $region30: #{_modulate_only.1} parent=1 // pred_check
      _
    $region31: #{_modulate_only.1} parent=1 // pred_check_branch
      %214 = sbr.rel (0) target = $region33
    $region32: #{_modulate_only.1} parent=1 // pred_region
      %215 = dma.done [#allocation4], 512
    $region33: #{_modulate_only.1} parent=1 // pred_fallthru
      _
    %216 = vsyncpa [#allocation3], 1
    %217 = vsyncpa [#allocation4], 1
    %218 = vsyncpa [#allocation5], 1
    %219 = vsyncpa [#allocation7], 1

</llo_original>
